<compile_context>
chip_gen: v5e
topology: v5e:2x2
jax: 0.10.0
libtpu: 0.0.40
codegen_flags: <defaults>
</compile_context>

<pallas_src>
import functools

import jax
import jax.numpy as jnp
from jax.experimental import pallas as pl
from jax.experimental.pallas import tpu as pltpu

_LANE = 128


def _round_up(n, m):
    return ((n + m - 1) // m) * m


def _dataset_encoder_kernel(x_ref, w1_ref, b1_ref, w2_ref, b2_ref,
                            w3_ref, b3_ref, w4_ref, b4_ref,
                            enc_ref, part_ref, *, valid_rows, block_rows):
    """One batch tile: 4 MXU matmuls (bf16 operands, f32 accum) + ReLUs + masked
    per-lane squared-error partial sums written as a dense (8, 128) slab."""
    x = x_ref[...]                                        # (TB, IN_PAD) f32

    # layer_one -> relu
    h = jnp.dot(x.astype(jnp.bfloat16), w1_ref[...],
                preferred_element_type=jnp.float32) + b1_ref[...]
    h = jnp.maximum(h, 0.0)

    # layer_two -> encoded output (f32)
    enc = jnp.dot(h.astype(jnp.bfloat16), w2_ref[...],
                  preferred_element_type=jnp.float32) + b2_ref[...]
    enc_ref[...] = enc.astype(enc_ref.dtype)

    # reconstruct: linear -> relu -> linear
    r = jnp.dot(enc.astype(jnp.bfloat16), w3_ref[...],
                preferred_element_type=jnp.float32) + b3_ref[...]
    r = jnp.maximum(r, 0.0)
    y = jnp.dot(r.astype(jnp.bfloat16), w4_ref[...],
                preferred_element_type=jnp.float32) + b4_ref[...]

    # Masked squared error.  Padded feature columns of x and y are exactly zero
    # (zero-padded weights/biases), so only rows past the true batch need masking.
    row0 = pl.program_id(0) * block_rows
    rows = jax.lax.broadcasted_iota(jnp.int32, (block_rows, 1), 0) + row0
    row_mask = (rows < valid_rows).astype(jnp.float32)
    diff = (x - y) * row_mask
    d2 = diff * diff                                      # (TB, IN_PAD) f32

    # Reduce rows to a single dense (8, IN_PAD) vreg slab of per-lane partial sums
    # (unmasked store; the tiny final reduce + divide happens outside the kernel).
    part = d2[0:8, :]
    for s in range(1, block_rows // 8):
        part = part + d2[s * 8:(s + 1) * 8, :]
    part_ref[...] = part[None]


def init_params(key, input_dim, hidden_dim, output_dim):
    """Deterministic synthetic parameters (shapes/init match the PyTorch module),
    weights stored as [in, out] (transposed vs nn.Linear)."""
    ks = jax.random.split(key, 8)

    def lin(kw, kb, fan_in, fan_out):
        bound = 1.0 / jnp.sqrt(fan_in)
        w = jax.random.uniform(kw, (fan_in, fan_out), jnp.float32, -bound, bound)
        b = jax.random.uniform(kb, (1, fan_out), jnp.float32, -bound, bound)
        return w, b

    w1, b1 = lin(ks[0], ks[1], input_dim, hidden_dim)   # layer_one
    w2, b2 = lin(ks[2], ks[3], hidden_dim, output_dim)  # layer_two
    w3, b3 = lin(ks[4], ks[5], output_dim, hidden_dim)  # reconstruct one
    w4, b4 = lin(ks[6], ks[7], hidden_dim, input_dim)   # reconstruct two
    return (w1, b1, w2, b2, w3, b3, w4, b4)


def pad_params(params):
    """Zero-pad every feature dim to a multiple of 128 lanes (done once); weights
    are stored bf16 for the MXU, biases stay f32."""
    w1, b1, w2, b2, w3, b3, w4, b4 = params

    def pad_w(w):
        i, o = w.shape
        wp = jnp.zeros((_round_up(i, _LANE), _round_up(o, _LANE)), jnp.float32)
        return wp.at[:i, :o].set(w).astype(jnp.bfloat16)

    def pad_b(b):
        o = b.shape[-1]
        bp = jnp.zeros((1, _round_up(o, _LANE)), jnp.float32)
        return bp.at[:, :o].set(b.reshape(1, -1))

    return (pad_w(w1), pad_b(b1), pad_w(w2), pad_b(b2),
            pad_w(w3), pad_b(b3), pad_w(w4), pad_b(b4))


@functools.partial(jax.jit, static_argnames=("output_dim", "block_rows"))
def dataset_encoder_forward(x, padded_params, *, output_dim, block_rows=128):
    """Returns (encoded, re_loss) matching DatasetEncoder.forward(x, inner_loop=False)."""
    assert block_rows % 8 == 0
    w1, b1, w2, b2, w3, b3, w4, b4 = padded_params
    batch, input_dim = x.shape
    in_pad, hid_pad = w1.shape
    out_pad = w2.shape[1]

    num_tiles = pl.cdiv(batch, block_rows)
    batch_pad = num_tiles * block_rows
    x_pad = jnp.zeros((batch_pad, in_pad), jnp.float32).at[:batch, :input_dim].set(x)

    kernel = functools.partial(_dataset_encoder_kernel,
                               valid_rows=batch, block_rows=block_rows)

    def resident(shape):
        nd = len(shape)
        return pl.BlockSpec(shape, lambda i, _nd=nd: (0,) * _nd)

    flops = 2 * batch_pad * (in_pad * hid_pad + hid_pad * out_pad
                             + out_pad * hid_pad + hid_pad * in_pad)
    w_bytes = sum(int(w.size) * w.dtype.itemsize for w in (w1, w2, w3, w4))
    b_bytes = sum(int(b.size) * 4 for b in (b1, b2, b3, b4))
    bytes_accessed = (batch_pad * in_pad * 4 + w_bytes + b_bytes
                      + batch_pad * out_pad * 4 + num_tiles * 8 * in_pad * 4)

    enc_full, parts = pl.pallas_call(
        kernel,
        out_shape=(
            jax.ShapeDtypeStruct((batch_pad, out_pad), jnp.float32),
            jax.ShapeDtypeStruct((num_tiles, 8, in_pad), jnp.float32),
        ),
        grid=(num_tiles,),
        in_specs=[
            pl.BlockSpec((block_rows, in_pad), lambda i: (i, 0)),   # x tile
            resident((in_pad, hid_pad)), resident((1, hid_pad)),    # W1, b1
            resident((hid_pad, out_pad)), resident((1, out_pad)),   # W2, b2
            resident((out_pad, hid_pad)), resident((1, hid_pad)),   # W3, b3
            resident((hid_pad, in_pad)), resident((1, in_pad)),     # W4, b4
        ],
        out_specs=(
            pl.BlockSpec((block_rows, out_pad), lambda i: (i, 0)),  # enc tile
            pl.BlockSpec((1, 8, in_pad), lambda i: (i, 0, 0)),      # MSE partials
        ),
        compiler_params=pltpu.CompilerParams(
            dimension_semantics=("parallel",),
            vmem_limit_bytes=32 * 1024 * 1024,
        ),
        cost_estimate=pl.CostEstimate(flops=flops, transcendentals=0,
                                      bytes_accessed=bytes_accessed),
    )(x_pad, w1, b1, w2, b2, w3, b3, w4, b4)

    enc = enc_full[:batch, :output_dim]
    re_loss = jnp.sum(parts) * (1.0 / (batch * input_dim))   # divide by ORIGINAL count
    return enc, re_loss


def reference_forward(x, params):
    w1, b1, w2, b2, w3, b3, w4, b4 = params
    h = jnp.maximum(x @ w1 + b1, 0.0)
    enc = h @ w2 + b2
    r = jnp.maximum(enc @ w3 + b3, 0.0)
    y = r @ w4 + b4
    return enc, jnp.mean((x - y) ** 2)


if __name__ == "__main__":
    input_dim, hidden_dim, output_dim = 32, 64, 16
    batch = 300  # not a multiple of the 128-row tile: exercises padding + row masking

    key = jax.random.PRNGKey(0)
    kx, kp = jax.random.split(key)
    x = jax.random.normal(kx, (batch, input_dim), dtype=jnp.float32)
    params = init_params(kp, input_dim, hidden_dim, output_dim)
    pparams = pad_params(params)  # padded/bf16 once, reused across calls

    enc, re_loss = dataset_encoder_forward(x, pparams, output_dim=output_dim)
    jax.block_until_ready((enc, re_loss))

    enc_exp, loss_exp = reference_forward(x, params)
    assert enc.shape == (batch, output_dim)
    # bf16 matmul operands with f32 accumulation -> loosened tolerances vs f32 reference.
    assert jnp.allclose(enc, enc_exp, atol=2e-2, rtol=2e-2), \
        float(jnp.max(jnp.abs(enc - enc_exp)))
    assert jnp.allclose(re_loss, loss_exp, atol=1e-2, rtol=1e-2), \
        (float(re_loss), float(loss_exp))

    print("KERNEL_OK")
</pallas_src>

<mosaic_0001>
module attributes {stable_mosaic.version = 11 : i64} {
  func.func @_dataset_encoder_kernel(%arg0: i32, %arg1: memref<128x128xf32, #tpu.memory_space<vmem>>, %arg2: memref<128x128xbf16, #tpu.memory_space<vmem>>, %arg3: memref<1x128xf32, #tpu.memory_space<vmem>>, %arg4: memref<128x128xbf16, #tpu.memory_space<vmem>>, %arg5: memref<1x128xf32, #tpu.memory_space<vmem>>, %arg6: memref<128x128xbf16, #tpu.memory_space<vmem>>, %arg7: memref<1x128xf32, #tpu.memory_space<vmem>>, %arg8: memref<128x128xbf16, #tpu.memory_space<vmem>>, %arg9: memref<1x128xf32, #tpu.memory_space<vmem>>, %arg10: memref<128x128xf32, #tpu.memory_space<vmem>>, %arg11: memref<1x8x128xf32, #tpu.memory_space<vmem>>) attributes {dimension_semantics = [#tpu.dimension_semantics<parallel>], iteration_bounds = array<i64: 3>, scalar_prefetch = 0 : i64, scratch_operands = 0 : i64, tpu.core_type = #tpu.core_type<tc>, window_params = [{transform_indices = @transform_0, window_bounds = array<i64: 128, 128>}, {pipeline_mode = #tpu.pipeline_mode<synchronous>, transform_indices = @transform_1, window_bounds = array<i64: 128, 128>}, {pipeline_mode = #tpu.pipeline_mode<synchronous>, transform_indices = @transform_2, window_bounds = array<i64: 1, 128>}, {pipeline_mode = #tpu.pipeline_mode<synchronous>, transform_indices = @transform_3, window_bounds = array<i64: 128, 128>}, {pipeline_mode = #tpu.pipeline_mode<synchronous>, transform_indices = @transform_4, window_bounds = array<i64: 1, 128>}, {pipeline_mode = #tpu.pipeline_mode<synchronous>, transform_indices = @transform_5, window_bounds = array<i64: 128, 128>}, {pipeline_mode = #tpu.pipeline_mode<synchronous>, transform_indices = @transform_6, window_bounds = array<i64: 1, 128>}, {pipeline_mode = #tpu.pipeline_mode<synchronous>, transform_indices = @transform_7, window_bounds = array<i64: 128, 128>}, {pipeline_mode = #tpu.pipeline_mode<synchronous>, transform_indices = @transform_8, window_bounds = array<i64: 1, 128>}, {transform_indices = @transform_9, window_bounds = array<i64: 128, 128>}, {transform_indices = @transform_10, window_bounds = array<i64: 1, 8, 128>}]} {
    %c0 = arith.constant 0 : index
    %c0_0 = arith.constant 0 : index
    %0 = vector.load %arg1[%c0, %c0_0] : memref<128x128xf32, #tpu.memory_space<vmem>>, vector<128x128xf32>
    %1 = arith.truncf %0 : vector<128x128xf32> to vector<128x128xbf16>
    %c0_1 = arith.constant 0 : index
    %c0_2 = arith.constant 0 : index
    %2 = vector.load %arg2[%c0_1, %c0_2] : memref<128x128xbf16, #tpu.memory_space<vmem>>, vector<128x128xbf16>
    %cst = arith.constant dense<0.000000e+00> : vector<128x128xf32>
    %3 = tpu.matmul %1, %2, %cst {dimension_numbers = #tpu.dot_dimension_numbers<[1], [0], [0], [1], [0, 0, 1, 1], [], []>} : vector<128x128xbf16>, vector<128x128xbf16>, vector<128x128xf32> -> vector<128x128xf32>
    %c0_3 = arith.constant 0 : index
    %c0_4 = arith.constant 0 : index
    %4 = vector.load %arg3[%c0_3, %c0_4] : memref<1x128xf32, #tpu.memory_space<vmem>>, vector<1x128xf32>
    %5 = vector.broadcast %4 : vector<1x128xf32> to vector<128x128xf32>
    %6 = arith.addf %3, %5 : vector<128x128xf32>
    %cst_5 = arith.constant 0.000000e+00 : f32
    %7 = vector.broadcast %cst_5 : f32 to vector<128x128xf32>
    %8 = arith.maximumf %6, %7 : vector<128x128xf32>
    %9 = arith.truncf %8 : vector<128x128xf32> to vector<128x128xbf16>
    %c0_6 = arith.constant 0 : index
    %c0_7 = arith.constant 0 : index
    %10 = vector.load %arg4[%c0_6, %c0_7] : memref<128x128xbf16, #tpu.memory_space<vmem>>, vector<128x128xbf16>
    %cst_8 = arith.constant dense<0.000000e+00> : vector<128x128xf32>
    %11 = tpu.matmul %9, %10, %cst_8 {dimension_numbers = #tpu.dot_dimension_numbers<[1], [0], [0], [1], [0, 0, 1, 1], [], []>} : vector<128x128xbf16>, vector<128x128xbf16>, vector<128x128xf32> -> vector<128x128xf32>
    %c0_9 = arith.constant 0 : index
    %c0_10 = arith.constant 0 : index
    %12 = vector.load %arg5[%c0_9, %c0_10] : memref<1x128xf32, #tpu.memory_space<vmem>>, vector<1x128xf32>
    %13 = vector.broadcast %12 : vector<1x128xf32> to vector<128x128xf32>
    %14 = arith.addf %11, %13 : vector<128x128xf32>
    %c0_11 = arith.constant 0 : index
    %c0_12 = arith.constant 0 : index
    %15 = vector.load %arg10[%c0_11, %c0_12] : memref<128x128xf32, #tpu.memory_space<vmem>>, vector<128x128xf32>
    tpu.vector_store %arg10[%c0_11, %c0_12], %14 {strides = array<i32>} : memref<128x128xf32, #tpu.memory_space<vmem>>, vector<128x128xf32>,
    %16 = arith.truncf %14 : vector<128x128xf32> to vector<128x128xbf16>
    %c0_13 = arith.constant 0 : index
    %c0_14 = arith.constant 0 : index
    %17 = vector.load %arg6[%c0_13, %c0_14] : memref<128x128xbf16, #tpu.memory_space<vmem>>, vector<128x128xbf16>
    %cst_15 = arith.constant dense<0.000000e+00> : vector<128x128xf32>
    %18 = tpu.matmul %16, %17, %cst_15 {dimension_numbers = #tpu.dot_dimension_numbers<[1], [0], [0], [1], [0, 0, 1, 1], [], []>} : vector<128x128xbf16>, vector<128x128xbf16>, vector<128x128xf32> -> vector<128x128xf32>
    %c0_16 = arith.constant 0 : index
    %c0_17 = arith.constant 0 : index
    %19 = vector.load %arg7[%c0_16, %c0_17] : memref<1x128xf32, #tpu.memory_space<vmem>>, vector<1x128xf32>
    %20 = vector.broadcast %19 : vector<1x128xf32> to vector<128x128xf32>
    %21 = arith.addf %18, %20 : vector<128x128xf32>
    %cst_18 = arith.constant 0.000000e+00 : f32
    %22 = vector.broadcast %cst_18 : f32 to vector<128x128xf32>
    %23 = arith.maximumf %21, %22 : vector<128x128xf32>
    %24 = arith.truncf %23 : vector<128x128xf32> to vector<128x128xbf16>
    %c0_19 = arith.constant 0 : index
    %c0_20 = arith.constant 0 : index
    %25 = vector.load %arg8[%c0_19, %c0_20] : memref<128x128xbf16, #tpu.memory_space<vmem>>, vector<128x128xbf16>
    %cst_21 = arith.constant dense<0.000000e+00> : vector<128x128xf32>
    %26 = tpu.matmul %24, %25, %cst_21 {dimension_numbers = #tpu.dot_dimension_numbers<[1], [0], [0], [1], [0, 0, 1, 1], [], []>} : vector<128x128xbf16>, vector<128x128xbf16>, vector<128x128xf32> -> vector<128x128xf32>
    %c0_22 = arith.constant 0 : index
    %c0_23 = arith.constant 0 : index
    %27 = vector.load %arg9[%c0_22, %c0_23] : memref<1x128xf32, #tpu.memory_space<vmem>>, vector<1x128xf32>
    %28 = vector.broadcast %27 : vector<1x128xf32> to vector<128x128xf32>
    %29 = arith.addf %26, %28 : vector<128x128xf32>
    %c128_i32 = arith.constant 128 : i32
    %30 = arith.muli %arg0, %c128_i32 : i32
    %31 = tpu.iota {dimensions = array<i32: 0>} : vector<128x1xi32>
    %32 = vector.broadcast %30 : i32 to vector<128x1xi32>
    %33 = arith.addi %31, %32 : vector<128x1xi32>
    %c300_i32 = arith.constant 300 : i32
    %34 = vector.broadcast %c300_i32 : i32 to vector<128x1xi32>
    %35 = arith.cmpi slt, %33, %34 : vector<128x1xi32>
    %36 = arith.extui %35 : vector<128x1xi1> to vector<128x1xi32>
    %37 = arith.sitofp %36 : vector<128x1xi32> to vector<128x1xf32>
    %38 = arith.subf %0, %29 : vector<128x128xf32>
    %39 = vector.broadcast %37 : vector<128x1xf32> to vector<128x128xf32>
    %40 = arith.mulf %38, %39 : vector<128x128xf32>
    %41 = arith.mulf %40, %40 : vector<128x128xf32>
    %42 = vector.extract_strided_slice %41 {offsets = [0, 0], sizes = [8, 128], strides = [1, 1]} : vector<128x128xf32> to vector<8x128xf32>
    %43 = vector.extract_strided_slice %41 {offsets = [8, 0], sizes = [8, 128], strides = [1, 1]} : vector<128x128xf32> to vector<8x128xf32>
    %44 = arith.addf %42, %43 : vector<8x128xf32>
    %45 = vector.extract_strided_slice %41 {offsets = [16, 0], sizes = [8, 128], strides = [1, 1]} : vector<128x128xf32> to vector<8x128xf32>
    %46 = arith.addf %44, %45 : vector<8x128xf32>
    %47 = vector.extract_strided_slice %41 {offsets = [24, 0], sizes = [8, 128], strides = [1, 1]} : vector<128x128xf32> to vector<8x128xf32>
    %48 = arith.addf %46, %47 : vector<8x128xf32>
    %49 = vector.extract_strided_slice %41 {offsets = [32, 0], sizes = [8, 128], strides = [1, 1]} : vector<128x128xf32> to vector<8x128xf32>
    %50 = arith.addf %48, %49 : vector<8x128xf32>
    %51 = vector.extract_strided_slice %41 {offsets = [40, 0], sizes = [8, 128], strides = [1, 1]} : vector<128x128xf32> to vector<8x128xf32>
    %52 = arith.addf %50, %51 : vector<8x128xf32>
    %53 = vector.extract_strided_slice %41 {offsets = [48, 0], sizes = [8, 128], strides = [1, 1]} : vector<128x128xf32> to vector<8x128xf32>
    %54 = arith.addf %52, %53 : vector<8x128xf32>
    %55 = vector.extract_strided_slice %41 {offsets = [56, 0], sizes = [8, 128], strides = [1, 1]} : vector<128x128xf32> to vector<8x128xf32>
    %56 = arith.addf %54, %55 : vector<8x128xf32>
    %57 = vector.extract_strided_slice %41 {offsets = [64, 0], sizes = [8, 128], strides = [1, 1]} : vector<128x128xf32> to vector<8x128xf32>
    %58 = arith.addf %56, %57 : vector<8x128xf32>
    %59 = vector.extract_strided_slice %41 {offsets = [72, 0], sizes = [8, 128], strides = [1, 1]} : vector<128x128xf32> to vector<8x128xf32>
    %60 = arith.addf %58, %59 : vector<8x128xf32>
    %61 = vector.extract_strided_slice %41 {offsets = [80, 0], sizes = [8, 128], strides = [1, 1]} : vector<128x128xf32> to vector<8x128xf32>
    %62 = arith.addf %60, %61 : vector<8x128xf32>
    %63 = vector.extract_strided_slice %41 {offsets = [88, 0], sizes = [8, 128], strides = [1, 1]} : vector<128x128xf32> to vector<8x128xf32>
    %64 = arith.addf %62, %63 : vector<8x128xf32>
    %65 = vector.extract_strided_slice %41 {offsets = [96, 0], sizes = [8, 128], strides = [1, 1]} : vector<128x128xf32> to vector<8x128xf32>
    %66 = arith.addf %64, %65 : vector<8x128xf32>
    %67 = vector.extract_strided_slice %41 {offsets = [104, 0], sizes = [8, 128], strides = [1, 1]} : vector<128x128xf32> to vector<8x128xf32>
    %68 = arith.addf %66, %67 : vector<8x128xf32>
    %69 = vector.extract_strided_slice %41 {offsets = [112, 0], sizes = [8, 128], strides = [1, 1]} : vector<128x128xf32> to vector<8x128xf32>
    %70 = arith.addf %68, %69 : vector<8x128xf32>
    %71 = vector.extract_strided_slice %41 {offsets = [120, 0], sizes = [8, 128], strides = [1, 1]} : vector<128x128xf32> to vector<8x128xf32>
    %72 = arith.addf %70, %71 : vector<8x128xf32>
    %73 = vector.shape_cast %72 : vector<8x128xf32> to vector<1x8x128xf32>
    %c0_24 = arith.constant 0 : index
    %c0_25 = arith.constant 0 : index
    %c0_26 = arith.constant 0 : index
    %74 = vector.load %arg11[%c0_24, %c0_25, %c0_26] : memref<1x8x128xf32, #tpu.memory_space<vmem>>, vector<1x8x128xf32>
    tpu.vector_store %arg11[%c0_24, %c0_25, %c0_26], %73 {strides = array<i32>} : memref<1x8x128xf32, #tpu.memory_space<vmem>>, vector<1x8x128xf32>,
    return
  }
  func.func @transform_0(%arg0: i32) -> (i32, i32) {
    %c0_i32 = arith.constant 0 : i32
    %c0_i32_0 = arith.constant 0 : i32
    return %arg0, %c0_i32 : i32, i32
  }
  func.func @transform_1(%arg0: i32) -> (i32, i32) {
    %c0_i32 = arith.constant 0 : i32
    %c0_i32_0 = arith.constant 0 : i32
    %c0_i32_1 = arith.constant 0 : i32
    return %c0_i32, %c0_i32_0 : i32, i32
  }
  func.func @transform_2(%arg0: i32) -> (i32, i32) {
    %c0_i32 = arith.constant 0 : i32
    %c0_i32_0 = arith.constant 0 : i32
    %c0_i32_1 = arith.constant 0 : i32
    return %c0_i32, %c0_i32_0 : i32, i32
  }
  func.func @transform_3(%arg0: i32) -> (i32, i32) {
    %c0_i32 = arith.constant 0 : i32
    %c0_i32_0 = arith.constant 0 : i32
    %c0_i32_1 = arith.constant 0 : i32
    return %c0_i32, %c0_i32_0 : i32, i32
  }
  func.func @transform_4(%arg0: i32) -> (i32, i32) {
    %c0_i32 = arith.constant 0 : i32
    %c0_i32_0 = arith.constant 0 : i32
    %c0_i32_1 = arith.constant 0 : i32
    return %c0_i32, %c0_i32_0 : i32, i32
  }
  func.func @transform_5(%arg0: i32) -> (i32, i32) {
    %c0_i32 = arith.constant 0 : i32
    %c0_i32_0 = arith.constant 0 : i32
    %c0_i32_1 = arith.constant 0 : i32
    return %c0_i32, %c0_i32_0 : i32, i32
  }
  func.func @transform_6(%arg0: i32) -> (i32, i32) {
    %c0_i32 = arith.constant 0 : i32
    %c0_i32_0 = arith.constant 0 : i32
    %c0_i32_1 = arith.constant 0 : i32
    return %c0_i32, %c0_i32_0 : i32, i32
  }
  func.func @transform_7(%arg0: i32) -> (i32, i32) {
    %c0_i32 = arith.constant 0 : i32
    %c0_i32_0 = arith.constant 0 : i32
    %c0_i32_1 = arith.constant 0 : i32
    return %c0_i32, %c0_i32_0 : i32, i32
  }
  func.func @transform_8(%arg0: i32) -> (i32, i32) {
    %c0_i32 = arith.constant 0 : i32
    %c0_i32_0 = arith.constant 0 : i32
    %c0_i32_1 = arith.constant 0 : i32
    return %c0_i32, %c0_i32_0 : i32, i32
  }
  func.func @transform_9(%arg0: i32) -> (i32, i32) {
    %c0_i32 = arith.constant 0 : i32
    %c0_i32_0 = arith.constant 0 : i32
    return %arg0, %c0_i32 : i32, i32
  }
  func.func @transform_10(%arg0: i32) -> (i32, i32, i32) {
    %c0_i32 = arith.constant 0 : i32
    %c0_i32_0 = arith.constant 0 : i32
    %c0_i32_1 = arith.constant 0 : i32
    return %arg0, %c0_i32, %c0_i32_0 : i32, i32, i32
  }
}

</mosaic_0001>

<llo_original>
// kernel: dataset_encoder_forward.1
$region0: #{dataset_encoder_forward.1}
  #allocation0 [shape = 'u32[]', space=smem, size = 0x4, offset = 0x4, fixed_abs, tag = 'smem constant byte address 0x4 - core index']
  #allocation1 [shape = 'u32[72,128]{1,0:T(1,128)}', space=vmem, size = 0x9000, scoped, tag = 'internal scratch']
  %s0 = inlined_call_operand.vmem [shape: f32[384,128], index: 0, kind: input, shape index: {}]
  %s1 = inlined_call_operand.vmem [shape: bf16[128,128], index: 1, kind: input, shape index: {}]
  %s2 = inlined_call_operand.vmem [shape: f32[1,128], index: 2, kind: input, shape index: {}]
  %s3 = inlined_call_operand.vmem [shape: bf16[128,128], index: 3, kind: input, shape index: {}]
  %s4 = inlined_call_operand.vmem [shape: f32[1,128], index: 4, kind: input, shape index: {}]
  %s5 = inlined_call_operand.vmem [shape: bf16[128,128], index: 5, kind: input, shape index: {}]
  %s6 = inlined_call_operand.vmem [shape: f32[1,128], index: 6, kind: input, shape index: {}]
  %s7 = inlined_call_operand.vmem [shape: bf16[128,128], index: 7, kind: input, shape index: {}]
  %s8 = inlined_call_operand.vmem [shape: f32[1,128], index: 8, kind: input, shape index: {}]
  %s9 = inlined_call_operand.vmem [shape: f32[384,128], index: 9, kind: output, shape index: {0}]
  %s10 = inlined_call_operand.vmem [shape: f32[3,8,128], index: 10, kind: output, shape index: {1}]
  %11 = xla_tuple %s9, %s10
  %s12 = sld [smem:[#allocation0]]
  $region77: #{dataset_encoder_forward.1} parent=0
    _
  %s14 = ssub.s32 1, %s12
  %s15 = scalar_select 0, %s14, %s12
  loop: start=0, step=1, limit=5
  $region2: #{dataset_encoder_forward.1} parent=0 // loop_pre_header
    _
  $region3: #{dataset_encoder_forward.1} parent=0 // loop_header
    %s17 = sphi 0, %s21
    %p18 = scmp.ge.s32.totalorder %s17, 5
    %s27 = sphi 0, %s29
    %s30 = sphi 0, %s27
    %s31 = sphi 0, %s30
    %s47 = sphi 0, %s31
    %s51 = sphi 0, %s51
    %s53 = sphi 0, %s51
    %s54 = sphi 0, %s53
    %s68 = sphi 0, %s54
    %s72 = sphi 0, %s72
    %s74 = sphi 0, %s72
    %s75 = sphi 0, %s74
    %s89 = sphi 0, %s75
    %s93 = sphi 0, %s93
    %s95 = sphi 0, %s93
    %s96 = sphi 0, %s95
    %s110 = sphi 0, %s96
    %s114 = sphi 0, %s114
    %s116 = sphi 0, %s114
    %s117 = sphi 0, %s116
    %s131 = sphi 0, %s117
    %s135 = sphi 0, %s135
    %s137 = sphi 0, %s135
    %s138 = sphi 0, %s137
    %s152 = sphi 0, %s138
    %s156 = sphi 0, %s156
    %s158 = sphi 0, %s156
    %s159 = sphi 0, %s158
    %s173 = sphi 0, %s159
    %s177 = sphi 0, %s177
    %s179 = sphi 0, %s177
    %s180 = sphi 0, %s179
    %s194 = sphi 0, %s180
    %s198 = sphi 0, %s198
    %s200 = sphi 0, %s198
    %s201 = sphi 0, %s200
    %s215 = sphi 0, %s201
    %s221 = sphi 0, %s223
    %s224 = sphi 0, %s221
    %s225 = sphi 0, %s224
    %s241 = sphi 0, %s225
    %s247 = sphi 0, %s249
    %s250 = sphi 0, %s247
    %s251 = sphi 0, %s250
    %s267 = sphi 0, %s251
  $region4: #{dataset_encoder_forward.1} parent=0 // loop_header_branch
    %20 = sbr.rel (%p18) target = $region8
  $region5: #{dataset_encoder_forward.1} parent=0 // loop_body
    %s22 = ssub.s32 %s17, 1
    %s23 = ssub.s32 %s17, 2
    %s24 = sadd.s32 %s17, 1
    %s25 = ssub.s32 %s17, %s24
    %p26 = scmp.eq.s32.totalorder %s25, 0
    %s28 = sadd.s32 %s27, 1
    %s29 = scalar_select %p26, %s27, %s28
    %p32 = pneg %p26
    %p33 = scmp.eq.s32.totalorder %s17, 2
    %p34 = por %p32, %p33
    %p35 = scmp.ne.s32.totalorder %s27, %s30
    %p36 = scmp.eq.s32.totalorder %s17, 0
    %p37 = por %p35, %p36
    %p38 = scmp.ne.s32.totalorder %s27, %s30
    %p39 = scmp.eq.s32.totalorder %s22, 2
    %p40 = por %p38, %p39
    %p41 = scmp.ne.s32.totalorder %s30, %s31
    %p42 = scmp.eq.s32.totalorder %s22, 0
    %p43 = por %p41, %p42
    %p44 = scmp.ne.s32.totalorder %s30, %s31
    %p45 = scmp.eq.s32.totalorder %s23, 2
    %p46 = por %p44, %p45
    %p48 = scmp.ne.s32.totalorder %s31, %s47
    %p49 = scmp.eq.s32.totalorder %s23, 0
    %p50 = por %p48, %p49
    %s52 = sadd.s32 %s51, 1
    %p55 = scmp.eq.s32.totalorder %s17, 2
    %p56 = scmp.ne.s32.totalorder %s51, %s53
    %p57 = scmp.eq.s32.totalorder %s17, 0
    %p58 = por %p56, %p57
    %p59 = scmp.ne.s32.totalorder %s51, %s53
    %p60 = scmp.eq.s32.totalorder %s22, 2
    %p61 = por %p59, %p60
    %p62 = scmp.ne.s32.totalorder %s53, %s54
    %p63 = scmp.eq.s32.totalorder %s22, 0
    %p64 = por %p62, %p63
    %p65 = scmp.ne.s32.totalorder %s53, %s54
    %p66 = scmp.eq.s32.totalorder %s23, 2
    %p67 = por %p65, %p66
    %p69 = scmp.ne.s32.totalorder %s54, %s68
    %p70 = scmp.eq.s32.totalorder %s23, 0
    %p71 = por %p69, %p70
    %s73 = sadd.s32 %s72, 1
    %p76 = scmp.eq.s32.totalorder %s17, 2
    %p77 = scmp.ne.s32.totalorder %s72, %s74
    %p78 = scmp.eq.s32.totalorder %s17, 0
    %p79 = por %p77, %p78
    %p80 = scmp.ne.s32.totalorder %s72, %s74
    %p81 = scmp.eq.s32.totalorder %s22, 2
    %p82 = por %p80, %p81
    %p83 = scmp.ne.s32.totalorder %s74, %s75
    %p84 = scmp.eq.s32.totalorder %s22, 0
    %p85 = por %p83, %p84
    %p86 = scmp.ne.s32.totalorder %s74, %s75
    %p87 = scmp.eq.s32.totalorder %s23, 2
    %p88 = por %p86, %p87
    %p90 = scmp.ne.s32.totalorder %s75, %s89
    %p91 = scmp.eq.s32.totalorder %s23, 0
    %p92 = por %p90, %p91
    %s94 = sadd.s32 %s93, 1
    %p97 = scmp.eq.s32.totalorder %s17, 2
    %p98 = scmp.ne.s32.totalorder %s93, %s95
    %p99 = scmp.eq.s32.totalorder %s17, 0
    %p100 = por %p98, %p99
    %p101 = scmp.ne.s32.totalorder %s93, %s95
    %p102 = scmp.eq.s32.totalorder %s22, 2
    %p103 = por %p101, %p102
    %p104 = scmp.ne.s32.totalorder %s95, %s96
    %p105 = scmp.eq.s32.totalorder %s22, 0
    %p106 = por %p104, %p105
    %p107 = scmp.ne.s32.totalorder %s95, %s96
    %p108 = scmp.eq.s32.totalorder %s23, 2
    %p109 = por %p107, %p108
    %p111 = scmp.ne.s32.totalorder %s96, %s110
    %p112 = scmp.eq.s32.totalorder %s23, 0
    %p113 = por %p111, %p112
    %s115 = sadd.s32 %s114, 1
    %p118 = scmp.eq.s32.totalorder %s17, 2
    %p119 = scmp.ne.s32.totalorder %s114, %s116
    %p120 = scmp.eq.s32.totalorder %s17, 0
    %p121 = por %p119, %p120
    %p122 = scmp.ne.s32.totalorder %s114, %s116
    %p123 = scmp.eq.s32.totalorder %s22, 2
    %p124 = por %p122, %p123
    %p125 = scmp.ne.s32.totalorder %s116, %s117
    %p126 = scmp.eq.s32.totalorder %s22, 0
    %p127 = por %p125, %p126
    %p128 = scmp.ne.s32.totalorder %s116, %s117
    %p129 = scmp.eq.s32.totalorder %s23, 2
    %p130 = por %p128, %p129
    %p132 = scmp.ne.s32.totalorder %s117, %s131
    %p133 = scmp.eq.s32.totalorder %s23, 0
    %p134 = por %p132, %p133
    %s136 = sadd.s32 %s135, 1
    %p139 = scmp.eq.s32.totalorder %s17, 2
    %p140 = scmp.ne.s32.totalorder %s135, %s137
    %p141 = scmp.eq.s32.totalorder %s17, 0
    %p142 = por %p140, %p141
    %p143 = scmp.ne.s32.totalorder %s135, %s137
    %p144 = scmp.eq.s32.totalorder %s22, 2
    %p145 = por %p143, %p144
    %p146 = scmp.ne.s32.totalorder %s137, %s138
    %p147 = scmp.eq.s32.totalorder %s22, 0
    %p148 = por %p146, %p147
    %p149 = scmp.ne.s32.totalorder %s137, %s138
    %p150 = scmp.eq.s32.totalorder %s23, 2
    %p151 = por %p149, %p150
    %p153 = scmp.ne.s32.totalorder %s138, %s152
    %p154 = scmp.eq.s32.totalorder %s23, 0
    %p155 = por %p153, %p154
    %s157 = sadd.s32 %s156, 1
    %p160 = scmp.eq.s32.totalorder %s17, 2
    %p161 = scmp.ne.s32.totalorder %s156, %s158
    %p162 = scmp.eq.s32.totalorder %s17, 0
    %p163 = por %p161, %p162
    %p164 = scmp.ne.s32.totalorder %s156, %s158
    %p165 = scmp.eq.s32.totalorder %s22, 2
    %p166 = por %p164, %p165
    %p167 = scmp.ne.s32.totalorder %s158, %s159
    %p168 = scmp.eq.s32.totalorder %s22, 0
    %p169 = por %p167, %p168
    %p170 = scmp.ne.s32.totalorder %s158, %s159
    %p171 = scmp.eq.s32.totalorder %s23, 2
    %p172 = por %p170, %p171
    %p174 = scmp.ne.s32.totalorder %s159, %s173
    %p175 = scmp.eq.s32.totalorder %s23, 0
    %p176 = por %p174, %p175
    %s178 = sadd.s32 %s177, 1
    %p181 = scmp.eq.s32.totalorder %s17, 2
    %p182 = scmp.ne.s32.totalorder %s177, %s179
    %p183 = scmp.eq.s32.totalorder %s17, 0
    %p184 = por %p182, %p183
    %p185 = scmp.ne.s32.totalorder %s177, %s179
    %p186 = scmp.eq.s32.totalorder %s22, 2
    %p187 = por %p185, %p186
    %p188 = scmp.ne.s32.totalorder %s179, %s180
    %p189 = scmp.eq.s32.totalorder %s22, 0
    %p190 = por %p188, %p189
    %p191 = scmp.ne.s32.totalorder %s179, %s180
    %p192 = scmp.eq.s32.totalorder %s23, 2
    %p193 = por %p191, %p192
    %p195 = scmp.ne.s32.totalorder %s180, %s194
    %p196 = scmp.eq.s32.totalorder %s23, 0
    %p197 = por %p195, %p196
    %s199 = sadd.s32 %s198, 1
    %p202 = scmp.eq.s32.totalorder %s17, 2
    %p203 = scmp.ne.s32.totalorder %s198, %s200
    %p204 = scmp.eq.s32.totalorder %s17, 0
    %p205 = por %p203, %p204
    %p206 = scmp.ne.s32.totalorder %s198, %s200
    %p207 = scmp.eq.s32.totalorder %s22, 2
    %p208 = por %p206, %p207
    %p209 = scmp.ne.s32.totalorder %s200, %s201
    %p210 = scmp.eq.s32.totalorder %s22, 0
    %p211 = por %p209, %p210
    %p212 = scmp.ne.s32.totalorder %s200, %s201
    %p213 = scmp.eq.s32.totalorder %s23, 2
    %p214 = por %p212, %p213
    %p216 = scmp.ne.s32.totalorder %s201, %s215
    %p217 = scmp.eq.s32.totalorder %s23, 0
    %p218 = por %p216, %p217
    %s219 = ssub.s32 %s17, %s24
    %p220 = scmp.eq.s32.totalorder %s219, 0
    %s222 = sadd.s32 %s221, 1
    %s223 = scalar_select %p220, %s221, %s222
    %p226 = pneg %p220
    %p227 = scmp.eq.s32.totalorder %s17, 2
    %p228 = por %p226, %p227
    %p229 = scmp.ne.s32.totalorder %s221, %s224
    %p230 = scmp.eq.s32.totalorder %s17, 0
    %p231 = por %p229, %p230
    %p232 = scmp.ne.s32.totalorder %s221, %s224
    %p233 = scmp.eq.s32.totalorder %s22, 2
    %p234 = por %p232, %p233
    %p235 = scmp.ne.s32.totalorder %s224, %s225
    %p236 = scmp.eq.s32.totalorder %s22, 0
    %p237 = por %p235, %p236
    %p238 = scmp.ne.s32.totalorder %s224, %s225
    %p239 = scmp.eq.s32.totalorder %s23, 2
    %p240 = por %p238, %p239
    %p242 = scmp.ne.s32.totalorder %s225, %s241
    %p243 = scmp.eq.s32.totalorder %s23, 0
    %p244 = por %p242, %p243
    %s245 = ssub.s32 %s17, %s24
    %p246 = scmp.eq.s32.totalorder %s245, 0
    %s248 = sadd.s32 %s247, 1
    %s249 = scalar_select %p246, %s247, %s248
    %p252 = pneg %p246
    %p253 = scmp.eq.s32.totalorder %s17, 2
    %p254 = por %p252, %p253
    %p255 = scmp.ne.s32.totalorder %s247, %s250
    %p256 = scmp.eq.s32.totalorder %s17, 0
    %p257 = por %p255, %p256
    %p258 = scmp.ne.s32.totalorder %s247, %s250
    %p259 = scmp.eq.s32.totalorder %s22, 2
    %p260 = por %p258, %p259
    %p261 = scmp.ne.s32.totalorder %s250, %s251
    %p262 = scmp.eq.s32.totalorder %s22, 0
    %p263 = por %p261, %p262
    %p264 = scmp.ne.s32.totalorder %s250, %s251
    %p265 = scmp.eq.s32.totalorder %s23, 2
    %p266 = por %p264, %p265
    %p268 = scmp.ne.s32.totalorder %s251, %s267
    %p269 = scmp.eq.s32.totalorder %s23, 0
    %p270 = por %p268, %p269
    %p271 = scmp.le.s32.totalorder 1, %s17
    %p272 = scmp.lt.s32.totalorder %s17, 4
    %p273 = pnand %p271, %p272
    %p274 = pneg %p273
    // Predicated region
    $region9: #{dataset_encoder_forward.1} parent=5 // pred_check
      _
    $region10: #{dataset_encoder_forward.1} parent=5 // pred_check_branch
      %276 = sbr.rel (%p273) target = $region12
    $region11: #{dataset_encoder_forward.1} parent=5 // pred_region
      %s277 = ssub.s32 %s17, 1
      // Predicated region
      $region13: #{dataset_encoder_forward.1} parent=11 // pred_check
        %p278 = pneg %p64
      $region14: #{dataset_encoder_forward.1} parent=11 // pred_check_branch
        %280 = sbr.rel (%p278) target = $region16
      $region15: #{dataset_encoder_forward.1} parent=11 // pred_region
        _
      $region16: #{dataset_encoder_forward.1} parent=11 // pred_fallthru
        _
      // Predicated region
      $region17: #{dataset_encoder_forward.1} parent=11 // pred_check
        %p281 = pneg %p85
      $region18: #{dataset_encoder_forward.1} parent=11 // pred_check_branch
        %283 = sbr.rel (%p281) target = $region20
      $region19: #{dataset_encoder_forward.1} parent=11 // pred_region
        _
      $region20: #{dataset_encoder_forward.1} parent=11 // pred_fallthru
        _
      // Predicated region
      $region21: #{dataset_encoder_forward.1} parent=11 // pred_check
        %p284 = pneg %p106
      $region22: #{dataset_encoder_forward.1} parent=11 // pred_check_branch
        %286 = sbr.rel (%p284) target = $region24
      $region23: #{dataset_encoder_forward.1} parent=11 // pred_region
        _
      $region24: #{dataset_encoder_forward.1} parent=11 // pred_fallthru
        _
      // Predicated region
      $region25: #{dataset_encoder_forward.1} parent=11 // pred_check
        %p287 = pneg %p127
      $region26: #{dataset_encoder_forward.1} parent=11 // pred_check_branch
        %289 = sbr.rel (%p287) target = $region28
      $region27: #{dataset_encoder_forward.1} parent=11 // pred_region
        _
      $region28: #{dataset_encoder_forward.1} parent=11 // pred_fallthru
        _
      // Predicated region
      $region29: #{dataset_encoder_forward.1} parent=11 // pred_check
        %p290 = pneg %p148
      $region30: #{dataset_encoder_forward.1} parent=11 // pred_check_branch
        %292 = sbr.rel (%p290) target = $region32
      $region31: #{dataset_encoder_forward.1} parent=11 // pred_region
        _
      $region32: #{dataset_encoder_forward.1} parent=11 // pred_fallthru
        _
      // Predicated region
      $region33: #{dataset_encoder_forward.1} parent=11 // pred_check
        %p293 = pneg %p169
      $region34: #{dataset_encoder_forward.1} parent=11 // pred_check_branch
        %295 = sbr.rel (%p293) target = $region36
      $region35: #{dataset_encoder_forward.1} parent=11 // pred_region
        _
      $region36: #{dataset_encoder_forward.1} parent=11 // pred_fallthru
        _
      // Predicated region
      $region37: #{dataset_encoder_forward.1} parent=11 // pred_check
        %p296 = pneg %p190
      $region38: #{dataset_encoder_forward.1} parent=11 // pred_check_branch
        %298 = sbr.rel (%p296) target = $region40
      $region39: #{dataset_encoder_forward.1} parent=11 // pred_region
        _
      $region40: #{dataset_encoder_forward.1} parent=11 // pred_fallthru
        _
      // Predicated region
      $region41: #{dataset_encoder_forward.1} parent=11 // pred_check
        %p299 = pneg %p211
      $region42: #{dataset_encoder_forward.1} parent=11 // pred_check_branch
        %301 = sbr.rel (%p299) target = $region44
      $region43: #{dataset_encoder_forward.1} parent=11 // pred_region
        _
      $region44: #{dataset_encoder_forward.1} parent=11 // pred_fallthru
        _
    $region12: #{dataset_encoder_forward.1} parent=5 // pred_fallthru
      _
    %p302 = scmp.lt.s32.totalorder %s17, 3
    // Predicated region
    $region45: #{dataset_encoder_forward.1} parent=5 // pred_check
      %p303 = pneg %p302
    $region46: #{dataset_encoder_forward.1} parent=5 // pred_check_branch
      %305 = sbr.rel (%p303) target = $region48
    $region47: #{dataset_encoder_forward.1} parent=5 // pred_region
      // Predicated region
      $region49: #{dataset_encoder_forward.1} parent=47 // pred_check
        %p306 = pneg %p37
      $region50: #{dataset_encoder_forward.1} parent=47 // pred_check_branch
        %308 = sbr.rel (%p306) target = $region52
      $region51: #{dataset_encoder_forward.1} parent=47 // pred_region
        %s309 = smul.u32 16, %s17
        %p310 = scmp.lt.s32.totalorder %s309, 47
        %s311 = scalar_select %p310, %s309, 47
        %s312 = smul.addr %s311, 8
        %s313 = scalar_lea.vmem %s0, %s312
        %s314 = smul.u32 16, %s17
      $region52: #{dataset_encoder_forward.1} parent=47 // pred_fallthru
        _
    $region48: #{dataset_encoder_forward.1} parent=5 // pred_fallthru
      _
    %p315 = scmp.le.s32.totalorder 1, %s17
    %p316 = scmp.lt.s32.totalorder %s17, 4
    %p317 = pnand %p315, %p316
    %p318 = pneg %p317
    // Predicated region
    $region53: #{dataset_encoder_forward.1} parent=5 // pred_check
      _
    $region54: #{dataset_encoder_forward.1} parent=5 // pred_check_branch
      %320 = sbr.rel (%p317) target = $region56
    $region55: #{dataset_encoder_forward.1} parent=5 // pred_region
      %s321 = ssub.s32 %s17, 1
      %s322 = smul.u32 16, %s22
      %p323 = scmp.lt.s32.totalorder %s322, 47
      %s324 = scalar_select %p323, %s322, 47
      %s325 = smul.addr %s324, 8
      %s326 = scalar_lea.vmem %s0, %s325
      %p327 = pneg %p43
      %p328 = pneg %p40
      %p329 = pneg %p64
      %p330 = pneg %p61
      %p331 = pneg %p85
      %p332 = pneg %p82
      %p333 = pneg %p106
      %p334 = pneg %p103
      %p335 = pneg %p127
      %p336 = pneg %p124
      %p337 = pneg %p148
      %p338 = pneg %p145
      %p339 = pneg %p169
      %p340 = pneg %p166
      %p341 = pneg %p190
      %p342 = pneg %p187
      %p343 = pneg %p211
      %p344 = pneg %p208
      %p345 = pneg %p237
      %p346 = pneg %p234
      %s347 = smul.u32 16, %s22
      %p348 = scmp.lt.s32.totalorder %s347, 47
      %s349 = scalar_select %p348, %s347, 47
      %s350 = smul.addr %s349, 8
      %s351 = scalar_lea.vmem %s9, %s350
      %p352 = pneg %p263
      %p353 = pneg %p260
      %p354 = scmp.lt.s32.totalorder %s22, 2
      %s355 = scalar_select %p354, %s22, 2
      %s356 = smul.addr %s355, 8
      %s357 = scalar_lea.vmem %s10, %s356
      %s358 = smul.u32 16, %s22
      %p359 = scmp.lt.s32.totalorder %s358, 47
      %s360 = scalar_select %p359, %s358, 47
      %s361 = smul.addr %s360, 8
      %s362 = scalar_lea.vmem %s0, %s361
      %s363 = smul.u32 16, %s22
      %s364 = smul.u32 16, %s22
      %p365 = scmp.lt.s32.totalorder %s364, 47
      %s366 = scalar_select %p365, %s364, 47
      %s367 = smul.addr %s366, 8
      %s368 = scalar_lea.vmem %s9, %s367
      %s369 = smul.u32 16, %s22
      %p370 = scmp.lt.s32.totalorder %s22, 2
      %s371 = scalar_select %p370, %s22, 2
      %s372 = smul.addr %s371, 8
      %s373 = scalar_lea.vmem %s10, %s372
      %v374 = vld [vmem:[%s362] sm:$0xff]
      %v375 = vld [vmem:[%s362 + $0x8] sm:$0xff]
      %v376 = vld [vmem:[%s362 + $0x10] sm:$0xff]
      %v377 = vld [vmem:[%s362 + $0x18] sm:$0xff]
      %v378 = vld [vmem:[%s362 + $0x20] sm:$0xff]
      %v379 = vld [vmem:[%s362 + $0x28] sm:$0xff]
      %v380 = vld [vmem:[%s362 + $0x30] sm:$0xff]
      %v381 = vld [vmem:[%s362 + $0x38] sm:$0xff]
      %v382 = vld [vmem:[%s362 + $0x40] sm:$0xff]
      %v383 = vld [vmem:[%s362 + $0x48] sm:$0xff]
      %v384 = vld [vmem:[%s362 + $0x50] sm:$0xff]
      %v385 = vld [vmem:[%s362 + $0x58] sm:$0xff]
      %v386 = vld [vmem:[%s362 + $0x60] sm:$0xff]
      %v387 = vld [vmem:[%s362 + $0x68] sm:$0xff]
      %v388 = vld [vmem:[%s362 + $0x70] sm:$0xff]
      %v389 = vld [vmem:[%s362 + $0x78] sm:$0xff]
      %v390 = vpack.c.bf16 %v375, %v374
      %v391 = vpack.c.bf16 %v377, %v376
      %v392 = vpack.c.bf16 %v379, %v378
      %v393 = vpack.c.bf16 %v381, %v380
      %v394 = vpack.c.bf16 %v383, %v382
      %v395 = vpack.c.bf16 %v385, %v384
      %v396 = vpack.c.bf16 %v387, %v386
      %v397 = vpack.c.bf16 %v389, %v388
      %v398 = vld [vmem:[%s1] sm:$0xf]
      %v399 = vld [vmem:[%s1 + $0x4] sm:$0xf]
      %v400 = vld [vmem:[%s1 + $0x8] sm:$0xf]
      %v401 = vld [vmem:[%s1 + $0xc] sm:$0xf]
      %v402 = vld [vmem:[%s1 + $0x10] sm:$0xf]
      %v403 = vld [vmem:[%s1 + $0x14] sm:$0xf]
      %v404 = vld [vmem:[%s1 + $0x18] sm:$0xf]
      %v405 = vld [vmem:[%s1 + $0x1c] sm:$0xf]
      %v406 = vld [vmem:[%s1 + $0x20] sm:$0xf]
      %v407 = vld [vmem:[%s1 + $0x24] sm:$0xf]
      %v408 = vld [vmem:[%s1 + $0x28] sm:$0xf]
      %v409 = vld [vmem:[%s1 + $0x2c] sm:$0xf]
      %v410 = vld [vmem:[%s1 + $0x30] sm:$0xf]
      %v411 = vld [vmem:[%s1 + $0x34] sm:$0xf]
      %v412 = vld [vmem:[%s1 + $0x38] sm:$0xf]
      %v413 = vld [vmem:[%s1 + $0x3c] sm:$0xf]
      %v414 = vld [vmem:[%s2] sm:$0x1]
      %v416 = vperm.slane %v414, 0
      %v434 = vunpack.c.l.b16 %v398
      %v435 = vunpack.c.l.b16 %v399
      %v436 = vunpack.c.l.b16 %v400
      %v437 = vunpack.c.l.b16 %v401
      %v438 = vunpack.c.l.b16 %v402
      %v439 = vunpack.c.l.b16 %v403
      %v440 = vunpack.c.l.b16 %v404
      %v441 = vunpack.c.l.b16 %v405
      %v442 = vunpack.c.l.b16 %v406
      %v443 = vunpack.c.l.b16 %v407
      %v444 = vunpack.c.l.b16 %v408
      %v445 = vunpack.c.l.b16 %v409
      %v446 = vunpack.c.l.b16 %v410
      %v447 = vunpack.c.l.b16 %v411
      %v448 = vunpack.c.l.b16 %v412
      %v449 = vunpack.c.l.b16 %v413
      %v450 = vpack.c.b16 %v435, %v434
      %v451 = vpack.c.b16 %v437, %v436
      %v452 = vpack.c.b16 %v439, %v438
      %v453 = vpack.c.b16 %v441, %v440
      %v454 = vpack.c.b16 %v443, %v442
      %v455 = vpack.c.b16 %v445, %v444
      %v456 = vpack.c.b16 %v447, %v446
      %v457 = vpack.c.b16 %v449, %v448
      %466 = vmatpush.bf16.msra.mxu0 %v457
      %467 = vmatpush.bf16.msra.mxu0 %v456
      %468 = vmatpush.bf16.msra.mxu0 %v455
      %469 = vmatpush.bf16.msra.mxu0 %v454
      %470 = vmatpush.bf16.msra.mxu0 %v453
      %471 = vmatpush.bf16.msra.mxu0 %v452
      %472 = vmatpush.bf16.msra.mxu0 %v451
      %473 = vmatpush.bf16.msra.mxu0 %v450
      %474 = vmatmul.bf16.gmra.mxu0 %v390
      %v475 = vpop.f32.mrf.mxu0
      %v476 = vadd.f32 %v416, %v475
      %v477 = vpop.f32.mrf.mxu0
      %v478 = vadd.f32 %v416, %v477
      %479 = vmatmul.bf16.gmra.mxu0 %v391
      %v480 = vpop.f32.mrf.mxu0
      %v481 = vadd.f32 %v416, %v480
      %v482 = vpop.f32.mrf.mxu0
      %v483 = vadd.f32 %v416, %v482
      %484 = vmatmul.bf16.gmra.mxu0 %v392
      %v485 = vpop.f32.mrf.mxu0
      %v486 = vadd.f32 %v416, %v485
      %v487 = vpop.f32.mrf.mxu0
      %v488 = vadd.f32 %v416, %v487
      %489 = vmatmul.bf16.gmra.mxu0 %v393
      %v490 = vpop.f32.mrf.mxu0
      %v491 = vadd.f32 %v416, %v490
      %v492 = vpop.f32.mrf.mxu0
      %v493 = vadd.f32 %v416, %v492
      %494 = vmatmul.bf16.gmra.mxu0 %v394
      %v495 = vpop.f32.mrf.mxu0
      %v496 = vadd.f32 %v416, %v495
      %v497 = vpop.f32.mrf.mxu0
      %v498 = vadd.f32 %v416, %v497
      %499 = vmatmul.bf16.gmra.mxu0 %v395
      %v500 = vpop.f32.mrf.mxu0
      %v501 = vadd.f32 %v416, %v500
      %v502 = vpop.f32.mrf.mxu0
      %v503 = vadd.f32 %v416, %v502
      %504 = vmatmul.bf16.gmra.mxu0 %v396
      %v505 = vpop.f32.mrf.mxu0
      %v506 = vadd.f32 %v416, %v505
      %v507 = vpop.f32.mrf.mxu0
      %v508 = vadd.f32 %v416, %v507
      %509 = vmatmul.bf16.gmra.mxu0 %v397
      %v510 = vpop.f32.mrf.mxu0
      %v511 = vadd.f32 %v416, %v510
      %v512 = vpop.f32.mrf.mxu0
      %v513 = vadd.f32 %v416, %v512
      %514 = vdwg.mxu0
      %v515 = vmax.f32 %v476, 0.0
      %v516 = vmax.f32 %v478, 0.0
      %v517 = vmax.f32 %v481, 0.0
      %v518 = vmax.f32 %v483, 0.0
      %v519 = vmax.f32 %v486, 0.0
      %v520 = vmax.f32 %v488, 0.0
      %v521 = vmax.f32 %v491, 0.0
      %v522 = vmax.f32 %v493, 0.0
      %v523 = vmax.f32 %v496, 0.0
      %v524 = vmax.f32 %v498, 0.0
      %v525 = vmax.f32 %v501, 0.0
      %v526 = vmax.f32 %v503, 0.0
      %v527 = vmax.f32 %v506, 0.0
      %v528 = vmax.f32 %v508, 0.0
      %v529 = vmax.f32 %v511, 0.0
      %v530 = vmax.f32 %v513, 0.0
      %v531 = vpack.c.bf16 %v516, %v515
      %v532 = vpack.c.bf16 %v518, %v517
      %v533 = vpack.c.bf16 %v520, %v519
      %v534 = vpack.c.bf16 %v522, %v521
      %v535 = vpack.c.bf16 %v524, %v523
      %v536 = vpack.c.bf16 %v526, %v525
      %v537 = vpack.c.bf16 %v528, %v527
      %v538 = vpack.c.bf16 %v530, %v529
      %v539 = vld [vmem:[%s3] sm:$0xf]
      %v540 = vld [vmem:[%s3 + $0x4] sm:$0xf]
      %v541 = vld [vmem:[%s3 + $0x8] sm:$0xf]
      %v542 = vld [vmem:[%s3 + $0xc] sm:$0xf]
      %v543 = vld [vmem:[%s3 + $0x10] sm:$0xf]
      %v544 = vld [vmem:[%s3 + $0x14] sm:$0xf]
      %v545 = vld [vmem:[%s3 + $0x18] sm:$0xf]
      %v546 = vld [vmem:[%s3 + $0x1c] sm:$0xf]
      %v547 = vld [vmem:[%s3 + $0x20] sm:$0xf]
      %v548 = vld [vmem:[%s3 + $0x24] sm:$0xf]
      %v549 = vld [vmem:[%s3 + $0x28] sm:$0xf]
      %v550 = vld [vmem:[%s3 + $0x2c] sm:$0xf]
      %v551 = vld [vmem:[%s3 + $0x30] sm:$0xf]
      %v552 = vld [vmem:[%s3 + $0x34] sm:$0xf]
      %v553 = vld [vmem:[%s3 + $0x38] sm:$0xf]
      %v554 = vld [vmem:[%s3 + $0x3c] sm:$0xf]
      %v555 = vld [vmem:[%s4] sm:$0x1]
      %v557 = vperm.slane %v555, 0
      %v575 = vunpack.c.l.b16 %v539
      %v576 = vunpack.c.l.b16 %v540
      %v577 = vunpack.c.l.b16 %v541
      %v578 = vunpack.c.l.b16 %v542
      %v579 = vunpack.c.l.b16 %v543
      %v580 = vunpack.c.l.b16 %v544
      %v581 = vunpack.c.l.b16 %v545
      %v582 = vunpack.c.l.b16 %v546
      %v583 = vunpack.c.l.b16 %v547
      %v584 = vunpack.c.l.b16 %v548
      %v585 = vunpack.c.l.b16 %v549
      %v586 = vunpack.c.l.b16 %v550
      %v587 = vunpack.c.l.b16 %v551
      %v588 = vunpack.c.l.b16 %v552
      %v589 = vunpack.c.l.b16 %v553
      %v590 = vunpack.c.l.b16 %v554
      %v591 = vpack.c.b16 %v576, %v575
      %v592 = vpack.c.b16 %v578, %v577
      %v593 = vpack.c.b16 %v580, %v579
      %v594 = vpack.c.b16 %v582, %v581
      %v595 = vpack.c.b16 %v584, %v583
      %v596 = vpack.c.b16 %v586, %v585
      %v597 = vpack.c.b16 %v588, %v587
      %v598 = vpack.c.b16 %v590, %v589
      %607 = vmatpush.bf16.msra.mxu0 %v598
      %608 = vmatpush.bf16.msra.mxu0 %v597
      %609 = vmatpush.bf16.msra.mxu0 %v596
      %610 = vmatpush.bf16.msra.mxu0 %v595
      %611 = vmatpush.bf16.msra.mxu0 %v594
      %612 = vmatpush.bf16.msra.mxu0 %v593
      %613 = vmatpush.bf16.msra.mxu0 %v592
      %614 = vmatpush.bf16.msra.mxu0 %v591
      %615 = vmatmul.bf16.gmra.mxu0 %v531
      %v616 = vpop.f32.mrf.mxu0
      %v617 = vadd.f32 %v557, %v616
      %v618 = vpop.f32.mrf.mxu0
      %v619 = vadd.f32 %v557, %v618
      %620 = vmatmul.bf16.gmra.mxu0 %v532
      %v621 = vpop.f32.mrf.mxu0
      %v622 = vadd.f32 %v557, %v621
      %v623 = vpop.f32.mrf.mxu0
      %v624 = vadd.f32 %v557, %v623
      %625 = vmatmul.bf16.gmra.mxu0 %v533
      %v626 = vpop.f32.mrf.mxu0
      %v627 = vadd.f32 %v557, %v626
      %v628 = vpop.f32.mrf.mxu0
      %v629 = vadd.f32 %v557, %v628
      %630 = vmatmul.bf16.gmra.mxu0 %v534
      %v631 = vpop.f32.mrf.mxu0
      %v632 = vadd.f32 %v557, %v631
      %v633 = vpop.f32.mrf.mxu0
      %v634 = vadd.f32 %v557, %v633
      %635 = vmatmul.bf16.gmra.mxu0 %v535
      %v636 = vpop.f32.mrf.mxu0
      %v637 = vadd.f32 %v557, %v636
      %v638 = vpop.f32.mrf.mxu0
      %v639 = vadd.f32 %v557, %v638
      %640 = vmatmul.bf16.gmra.mxu0 %v536
      %v641 = vpop.f32.mrf.mxu0
      %v642 = vadd.f32 %v557, %v641
      %v643 = vpop.f32.mrf.mxu0
      %v644 = vadd.f32 %v557, %v643
      %645 = vmatmul.bf16.gmra.mxu0 %v537
      %v646 = vpop.f32.mrf.mxu0
      %v647 = vadd.f32 %v557, %v646
      %v648 = vpop.f32.mrf.mxu0
      %v649 = vadd.f32 %v557, %v648
      %650 = vmatmul.bf16.gmra.mxu0 %v538
      %v651 = vpop.f32.mrf.mxu0
      %v652 = vadd.f32 %v557, %v651
      %v653 = vpop.f32.mrf.mxu0
      %v654 = vadd.f32 %v557, %v653
      %655 = vdwg.mxu0
      %656 = vst [vmem:[%s368] sm:$0xff] %v617
      %657 = vst [vmem:[%s368 + $0x8] sm:$0xff] %v619
      %658 = vst [vmem:[%s368 + $0x10] sm:$0xff] %v622
      %659 = vst [vmem:[%s368 + $0x18] sm:$0xff] %v624
      %660 = vst [vmem:[%s368 + $0x20] sm:$0xff] %v627
      %661 = vst [vmem:[%s368 + $0x28] sm:$0xff] %v629
      %662 = vst [vmem:[%s368 + $0x30] sm:$0xff] %v632
      %663 = vst [vmem:[%s368 + $0x38] sm:$0xff] %v634
      %664 = vst [vmem:[%s368 + $0x40] sm:$0xff] %v637
      %665 = vst [vmem:[%s368 + $0x48] sm:$0xff] %v639
      %666 = vst [vmem:[%s368 + $0x50] sm:$0xff] %v642
      %667 = vst [vmem:[%s368 + $0x58] sm:$0xff] %v644
      %668 = vst [vmem:[%s368 + $0x60] sm:$0xff] %v647
      %669 = vst [vmem:[%s368 + $0x68] sm:$0xff] %v649
      %670 = vst [vmem:[%s368 + $0x70] sm:$0xff] %v652
      %671 = vst [vmem:[%s368 + $0x78] sm:$0xff] %v654
      %v672 = vpack.c.bf16 %v619, %v617
      %v673 = vpack.c.bf16 %v624, %v622
      %v674 = vpack.c.bf16 %v629, %v627
      %v675 = vpack.c.bf16 %v634, %v632
      %v676 = vpack.c.bf16 %v639, %v637
      %v677 = vpack.c.bf16 %v644, %v642
      %v678 = vpack.c.bf16 %v649, %v647
      %v679 = vpack.c.bf16 %v654, %v652
      %v680 = vld [vmem:[%s5] sm:$0xf]
      %v681 = vld [vmem:[%s5 + $0x4] sm:$0xf]
      %v682 = vld [vmem:[%s5 + $0x8] sm:$0xf]
      %v683 = vld [vmem:[%s5 + $0xc] sm:$0xf]
      %v684 = vld [vmem:[%s5 + $0x10] sm:$0xf]
      %v685 = vld [vmem:[%s5 + $0x14] sm:$0xf]
      %v686 = vld [vmem:[%s5 + $0x18] sm:$0xf]
      %v687 = vld [vmem:[%s5 + $0x1c] sm:$0xf]
      %v688 = vld [vmem:[%s5 + $0x20] sm:$0xf]
      %v689 = vld [vmem:[%s5 + $0x24] sm:$0xf]
      %v690 = vld [vmem:[%s5 + $0x28] sm:$0xf]
      %v691 = vld [vmem:[%s5 + $0x2c] sm:$0xf]
      %v692 = vld [vmem:[%s5 + $0x30] sm:$0xf]
      %v693 = vld [vmem:[%s5 + $0x34] sm:$0xf]
      %v694 = vld [vmem:[%s5 + $0x38] sm:$0xf]
      %v695 = vld [vmem:[%s5 + $0x3c] sm:$0xf]
      %v696 = vld [vmem:[%s6] sm:$0x1]
      %v698 = vperm.slane %v696, 0
      %v716 = vunpack.c.l.b16 %v680
      %v717 = vunpack.c.l.b16 %v681
      %v718 = vunpack.c.l.b16 %v682
      %v719 = vunpack.c.l.b16 %v683
      %v720 = vunpack.c.l.b16 %v684
      %v721 = vunpack.c.l.b16 %v685
      %v722 = vunpack.c.l.b16 %v686
      %v723 = vunpack.c.l.b16 %v687
      %v724 = vunpack.c.l.b16 %v688
      %v725 = vunpack.c.l.b16 %v689
      %v726 = vunpack.c.l.b16 %v690
      %v727 = vunpack.c.l.b16 %v691
      %v728 = vunpack.c.l.b16 %v692
      %v729 = vunpack.c.l.b16 %v693
      %v730 = vunpack.c.l.b16 %v694
      %v731 = vunpack.c.l.b16 %v695
      %v732 = vpack.c.b16 %v717, %v716
      %v733 = vpack.c.b16 %v719, %v718
      %v734 = vpack.c.b16 %v721, %v720
      %v735 = vpack.c.b16 %v723, %v722
      %v736 = vpack.c.b16 %v725, %v724
      %v737 = vpack.c.b16 %v727, %v726
      %v738 = vpack.c.b16 %v729, %v728
      %v739 = vpack.c.b16 %v731, %v730
      %748 = vmatpush.bf16.msra.mxu0 %v739
      %749 = vmatpush.bf16.msra.mxu0 %v738
      %750 = vmatpush.bf16.msra.mxu0 %v737
      %751 = vmatpush.bf16.msra.mxu0 %v736
      %752 = vmatpush.bf16.msra.mxu0 %v735
      %753 = vmatpush.bf16.msra.mxu0 %v734
      %754 = vmatpush.bf16.msra.mxu0 %v733
      %755 = vmatpush.bf16.msra.mxu0 %v732
      %756 = vmatmul.bf16.gmra.mxu0 %v672
      %v757 = vpop.f32.mrf.mxu0
      %v758 = vadd.f32 %v698, %v757
      %v759 = vpop.f32.mrf.mxu0
      %v760 = vadd.f32 %v698, %v759
      %761 = vmatmul.bf16.gmra.mxu0 %v673
      %v762 = vpop.f32.mrf.mxu0
      %v763 = vadd.f32 %v698, %v762
      %v764 = vpop.f32.mrf.mxu0
      %v765 = vadd.f32 %v698, %v764
      %766 = vmatmul.bf16.gmra.mxu0 %v674
      %v767 = vpop.f32.mrf.mxu0
      %v768 = vadd.f32 %v698, %v767
      %v769 = vpop.f32.mrf.mxu0
      %v770 = vadd.f32 %v698, %v769
      %771 = vmatmul.bf16.gmra.mxu0 %v675
      %v772 = vpop.f32.mrf.mxu0
      %v773 = vadd.f32 %v698, %v772
      %v774 = vpop.f32.mrf.mxu0
      %v775 = vadd.f32 %v698, %v774
      %776 = vmatmul.bf16.gmra.mxu0 %v676
      %v777 = vpop.f32.mrf.mxu0
      %v778 = vadd.f32 %v698, %v777
      %v779 = vpop.f32.mrf.mxu0
      %v780 = vadd.f32 %v698, %v779
      %781 = vmatmul.bf16.gmra.mxu0 %v677
      %v782 = vpop.f32.mrf.mxu0
      %v783 = vadd.f32 %v698, %v782
      %v784 = vpop.f32.mrf.mxu0
      %v785 = vadd.f32 %v698, %v784
      %786 = vmatmul.bf16.gmra.mxu0 %v678
      %v787 = vpop.f32.mrf.mxu0
      %v788 = vadd.f32 %v698, %v787
      %v789 = vpop.f32.mrf.mxu0
      %v790 = vadd.f32 %v698, %v789
      %791 = vmatmul.bf16.gmra.mxu0 %v679
      %v792 = vpop.f32.mrf.mxu0
      %v793 = vadd.f32 %v698, %v792
      %v794 = vpop.f32.mrf.mxu0
      %v795 = vadd.f32 %v698, %v794
      %796 = vdwg.mxu0
      %v797 = vmax.f32 %v758, 0.0
      %v798 = vmax.f32 %v760, 0.0
      %v799 = vmax.f32 %v763, 0.0
      %v800 = vmax.f32 %v765, 0.0
      %v801 = vmax.f32 %v768, 0.0
      %v802 = vmax.f32 %v770, 0.0
      %v803 = vmax.f32 %v773, 0.0
      %v804 = vmax.f32 %v775, 0.0
      %v805 = vmax.f32 %v778, 0.0
      %v806 = vmax.f32 %v780, 0.0
      %v807 = vmax.f32 %v783, 0.0
      %v808 = vmax.f32 %v785, 0.0
      %v809 = vmax.f32 %v788, 0.0
      %v810 = vmax.f32 %v790, 0.0
      %v811 = vmax.f32 %v793, 0.0
      %v812 = vmax.f32 %v795, 0.0
      %v813 = vpack.c.bf16 %v798, %v797
      %v814 = vpack.c.bf16 %v800, %v799
      %v815 = vpack.c.bf16 %v802, %v801
      %v816 = vpack.c.bf16 %v804, %v803
      %v817 = vpack.c.bf16 %v806, %v805
      %v818 = vpack.c.bf16 %v808, %v807
      %v819 = vpack.c.bf16 %v810, %v809
      %v820 = vpack.c.bf16 %v812, %v811
      %v821 = vld [vmem:[%s7] sm:$0xf]
      %v822 = vld [vmem:[%s7 + $0x4] sm:$0xf]
      %v823 = vld [vmem:[%s7 + $0x8] sm:$0xf]
      %v824 = vld [vmem:[%s7 + $0xc] sm:$0xf]
      %v825 = vld [vmem:[%s7 + $0x10] sm:$0xf]
      %v826 = vld [vmem:[%s7 + $0x14] sm:$0xf]
      %v827 = vld [vmem:[%s7 + $0x18] sm:$0xf]
      %v828 = vld [vmem:[%s7 + $0x1c] sm:$0xf]
      %v829 = vld [vmem:[%s7 + $0x20] sm:$0xf]
      %v830 = vld [vmem:[%s7 + $0x24] sm:$0xf]
      %v831 = vld [vmem:[%s7 + $0x28] sm:$0xf]
      %v832 = vld [vmem:[%s7 + $0x2c] sm:$0xf]
      %v833 = vld [vmem:[%s7 + $0x30] sm:$0xf]
      %v834 = vld [vmem:[%s7 + $0x34] sm:$0xf]
      %v835 = vld [vmem:[%s7 + $0x38] sm:$0xf]
      %v836 = vld [vmem:[%s7 + $0x3c] sm:$0xf]
      %v837 = vld [vmem:[%s8] sm:$0x1]
      %v839 = vperm.slane %v837, 0
      %v857 = vunpack.c.l.b16 %v821
      %v858 = vunpack.c.l.b16 %v822
      %v859 = vunpack.c.l.b16 %v823
      %v860 = vunpack.c.l.b16 %v824
      %v861 = vunpack.c.l.b16 %v825
      %v862 = vunpack.c.l.b16 %v826
      %v863 = vunpack.c.l.b16 %v827
      %v864 = vunpack.c.l.b16 %v828
      %v865 = vunpack.c.l.b16 %v829
      %v866 = vunpack.c.l.b16 %v830
      %v867 = vunpack.c.l.b16 %v831
      %v868 = vunpack.c.l.b16 %v832
      %v869 = vunpack.c.l.b16 %v833
      %v870 = vunpack.c.l.b16 %v834
      %v871 = vunpack.c.l.b16 %v835
      %v872 = vunpack.c.l.b16 %v836
      %v873 = vpack.c.b16 %v858, %v857
      %v874 = vpack.c.b16 %v860, %v859
      %v875 = vpack.c.b16 %v862, %v861
      %v876 = vpack.c.b16 %v864, %v863
      %v877 = vpack.c.b16 %v866, %v865
      %v878 = vpack.c.b16 %v868, %v867
      %v879 = vpack.c.b16 %v870, %v869
      %v880 = vpack.c.b16 %v872, %v871
      %889 = vmatpush.bf16.msra.mxu0 %v880
      %890 = vmatpush.bf16.msra.mxu0 %v879
      %891 = vmatpush.bf16.msra.mxu0 %v878
      %892 = vmatpush.bf16.msra.mxu0 %v877
      %893 = vmatpush.bf16.msra.mxu0 %v876
      %894 = vmatpush.bf16.msra.mxu0 %v875
      %895 = vmatpush.bf16.msra.mxu0 %v874
      %896 = vmatpush.bf16.msra.mxu0 %v873
      %897 = vmatmul.bf16.gmra.mxu0 %v813
      %v898 = vpop.f32.mrf.mxu0
      %v899 = vadd.f32 %v839, %v898
      %v900 = vpop.f32.mrf.mxu0
      %v901 = vadd.f32 %v839, %v900
      %902 = vmatmul.bf16.gmra.mxu0 %v814
      %v903 = vpop.f32.mrf.mxu0
      %v904 = vadd.f32 %v839, %v903
      %v905 = vpop.f32.mrf.mxu0
      %v906 = vadd.f32 %v839, %v905
      %907 = vmatmul.bf16.gmra.mxu0 %v815
      %v908 = vpop.f32.mrf.mxu0
      %v909 = vadd.f32 %v839, %v908
      %v910 = vpop.f32.mrf.mxu0
      %v911 = vadd.f32 %v839, %v910
      %912 = vmatmul.bf16.gmra.mxu0 %v816
      %v913 = vpop.f32.mrf.mxu0
      %v914 = vadd.f32 %v839, %v913
      %v915 = vpop.f32.mrf.mxu0
      %v916 = vadd.f32 %v839, %v915
      %917 = vmatmul.bf16.gmra.mxu0 %v817
      %v918 = vpop.f32.mrf.mxu0
      %v919 = vadd.f32 %v839, %v918
      %v920 = vpop.f32.mrf.mxu0
      %v921 = vadd.f32 %v839, %v920
      %922 = vmatmul.bf16.gmra.mxu0 %v818
      %v923 = vpop.f32.mrf.mxu0
      %v924 = vadd.f32 %v839, %v923
      %v925 = vpop.f32.mrf.mxu0
      %v926 = vadd.f32 %v839, %v925
      %927 = vmatmul.bf16.gmra.mxu0 %v819
      %v928 = vpop.f32.mrf.mxu0
      %v929 = vadd.f32 %v839, %v928
      %v930 = vpop.f32.mrf.mxu0
      %v931 = vadd.f32 %v839, %v930
      %932 = vmatmul.bf16.gmra.mxu0 %v820
      %v933 = vpop.f32.mrf.mxu0
      %v934 = vadd.f32 %v839, %v933
      %v935 = vpop.f32.mrf.mxu0
      %v936 = vadd.f32 %v839, %v935
      %937 = vdwg.mxu0
      %s938 = smul.u32 %s22, 128
      %v939 = vlaneseq
      %v940 = vshrl.u32 %v939, 7
      %v941 = vadd.s32 %v940, 8
      %v942 = vadd.s32 %v940, 16
      %v943 = vadd.s32 %v940, 24
      %v944 = vadd.s32 %v940, 32
      %v945 = vadd.s32 %v940, 40
      %v946 = vadd.s32 %v940, 48
      %v947 = vadd.s32 %v940, 56
      %v948 = vadd.s32 %v940, 64
      %v949 = vadd.s32 %v940, 72
      %v950 = vadd.s32 %v940, 80
      %v951 = vadd.s32 %v940, 88
      %v952 = vadd.s32 %v940, 96
      %v953 = vadd.s32 %v940, 104
      %v954 = vadd.s32 %v940, 112
      %v955 = vadd.s32 %v940, 120
      %v956 = vstv %s938
      %v957 = vadd.s32 %v940, %v956
      %v958 = vadd.s32 %v941, %v956
      %v959 = vadd.s32 %v942, %v956
      %v960 = vadd.s32 %v943, %v956
      %v961 = vadd.s32 %v944, %v956
      %v962 = vadd.s32 %v945, %v956
      %v963 = vadd.s32 %v946, %v956
      %v964 = vadd.s32 %v947, %v956
      %v965 = vadd.s32 %v948, %v956
      %v966 = vadd.s32 %v949, %v956
      %v967 = vadd.s32 %v950, %v956
      %v968 = vadd.s32 %v951, %v956
      %v969 = vadd.s32 %v952, %v956
      %v970 = vadd.s32 %v953, %v956
      %v971 = vadd.s32 %v954, %v956
      %v972 = vadd.s32 %v955, %v956
      %vm973 = vcmp.lt.s32.totalorder %v957, 300
      %vm974 = vcmp.lt.s32.totalorder %v958, 300
      %vm975 = vcmp.lt.s32.totalorder %v959, 300
      %vm976 = vcmp.lt.s32.totalorder %v960, 300
      %vm977 = vcmp.lt.s32.totalorder %v961, 300
      %vm978 = vcmp.lt.s32.totalorder %v962, 300
      %vm979 = vcmp.lt.s32.totalorder %v963, 300
      %vm980 = vcmp.lt.s32.totalorder %v964, 300
      %vm981 = vcmp.lt.s32.totalorder %v965, 300
      %vm982 = vcmp.lt.s32.totalorder %v966, 300
      %vm983 = vcmp.lt.s32.totalorder %v967, 300
      %vm984 = vcmp.lt.s32.totalorder %v968, 300
      %vm985 = vcmp.lt.s32.totalorder %v969, 300
      %vm986 = vcmp.lt.s32.totalorder %v970, 300
      %vm987 = vcmp.lt.s32.totalorder %v971, 300
      %vm988 = vcmp.lt.s32.totalorder %v972, 300
      %v989 = vsel %vm973, 1, 0
      %v990 = vsel %vm974, 1, 0
      %v991 = vsel %vm975, 1, 0
      %v992 = vsel %vm976, 1, 0
      %v993 = vsel %vm977, 1, 0
      %v994 = vsel %vm978, 1, 0
      %v995 = vsel %vm979, 1, 0
      %v996 = vsel %vm980, 1, 0
      %v997 = vsel %vm981, 1, 0
      %v998 = vsel %vm982, 1, 0
      %v999 = vsel %vm983, 1, 0
      %v1000 = vsel %vm984, 1, 0
      %v1001 = vsel %vm985, 1, 0
      %v1002 = vsel %vm986, 1, 0
      %v1003 = vsel %vm987, 1, 0
      %v1004 = vsel %vm988, 1, 0
      %v1005 = vcvt.s32.f32 %v989
      %v1006 = vcvt.s32.f32 %v990
      %v1007 = vcvt.s32.f32 %v991
      %v1008 = vcvt.s32.f32 %v992
      %v1009 = vcvt.s32.f32 %v993
      %v1010 = vcvt.s32.f32 %v994
      %v1011 = vcvt.s32.f32 %v995
      %v1012 = vcvt.s32.f32 %v996
      %v1013 = vcvt.s32.f32 %v997
      %v1014 = vcvt.s32.f32 %v998
      %v1015 = vcvt.s32.f32 %v999
      %v1016 = vcvt.s32.f32 %v1000
      %v1017 = vcvt.s32.f32 %v1001
      %v1018 = vcvt.s32.f32 %v1002
      %v1019 = vcvt.s32.f32 %v1003
      %v1020 = vcvt.s32.f32 %v1004
      %v1021 = vsub.f32 %v374, %v899
      %v1022 = vsub.f32 %v375, %v901
      %v1023 = vsub.f32 %v376, %v904
      %v1024 = vsub.f32 %v377, %v906
      %v1025 = vsub.f32 %v378, %v909
      %v1026 = vsub.f32 %v379, %v911
      %v1027 = vsub.f32 %v380, %v914
      %v1028 = vsub.f32 %v381, %v916
      %v1029 = vsub.f32 %v382, %v919
      %v1030 = vsub.f32 %v383, %v921
      %v1031 = vsub.f32 %v384, %v924
      %v1032 = vsub.f32 %v385, %v926
      %v1033 = vsub.f32 %v386, %v929
      %v1034 = vsub.f32 %v387, %v931
      %v1035 = vsub.f32 %v388, %v934
      %v1036 = vsub.f32 %v389, %v936
      %v1037 = vmul.f32 %v1021, %v1005
      %v1038 = vmul.f32 %v1022, %v1006
      %v1039 = vmul.f32 %v1023, %v1007
      %v1040 = vmul.f32 %v1024, %v1008
      %v1041 = vmul.f32 %v1025, %v1009
      %v1042 = vmul.f32 %v1026, %v1010
      %v1043 = vmul.f32 %v1027, %v1011
      %v1044 = vmul.f32 %v1028, %v1012
      %v1045 = vmul.f32 %v1029, %v1013
      %v1046 = vmul.f32 %v1030, %v1014
      %v1047 = vmul.f32 %v1031, %v1015
      %v1048 = vmul.f32 %v1032, %v1016
      %v1049 = vmul.f32 %v1033, %v1017
      %v1050 = vmul.f32 %v1034, %v1018
      %v1051 = vmul.f32 %v1035, %v1019
      %v1052 = vmul.f32 %v1036, %v1020
      %v1053 = vmul.f32 %v1037, %v1037
      %v1054 = vmul.f32 %v1038, %v1038
      %v1055 = vmul.f32 %v1039, %v1039
      %v1056 = vmul.f32 %v1040, %v1040
      %v1057 = vmul.f32 %v1041, %v1041
      %v1058 = vmul.f32 %v1042, %v1042
      %v1059 = vmul.f32 %v1043, %v1043
      %v1060 = vmul.f32 %v1044, %v1044
      %v1061 = vmul.f32 %v1045, %v1045
      %v1062 = vmul.f32 %v1046, %v1046
      %v1063 = vmul.f32 %v1047, %v1047
      %v1064 = vmul.f32 %v1048, %v1048
      %v1065 = vmul.f32 %v1049, %v1049
      %v1066 = vmul.f32 %v1050, %v1050
      %v1067 = vmul.f32 %v1051, %v1051
      %v1068 = vmul.f32 %v1052, %v1052
      %v1069 = vadd.f32 %v1053, %v1054
      %v1070 = vadd.f32 %v1069, %v1055
      %v1071 = vadd.f32 %v1070, %v1056
      %v1072 = vadd.f32 %v1071, %v1057
      %v1073 = vadd.f32 %v1072, %v1058
      %v1074 = vadd.f32 %v1073, %v1059
      %v1075 = vadd.f32 %v1074, %v1060
      %v1076 = vadd.f32 %v1075, %v1061
      %v1077 = vadd.f32 %v1076, %v1062
      %v1078 = vadd.f32 %v1077, %v1063
      %v1079 = vadd.f32 %v1078, %v1064
      %v1080 = vadd.f32 %v1079, %v1065
      %v1081 = vadd.f32 %v1080, %v1066
      %v1082 = vadd.f32 %v1081, %v1067
      %v1083 = vadd.f32 %v1082, %v1068
      %1084 = vst [vmem:[%s373] sm:$0xff] %v1083
      %s1085 = smul.u32 16, %s22
      %p1086 = scmp.lt.s32.totalorder %s1085, 47
      %s1087 = scalar_select %p1086, %s1085, 47
      %s1088 = smul.addr %s1087, 8
      %s1089 = scalar_lea.vmem %s9, %s1088
      %p1090 = scmp.lt.s32.totalorder %s22, 2
      %s1091 = scalar_select %p1090, %s22, 2
      %s1092 = smul.addr %s1091, 8
      %s1093 = scalar_lea.vmem %s10, %s1092
      // Predicated region
      $region57: #{dataset_encoder_forward.1} parent=55 // pred_check
        %p1094 = pneg %p234
      $region58: #{dataset_encoder_forward.1} parent=55 // pred_check_branch
        %1096 = sbr.rel (%p1094) target = $region60
      $region59: #{dataset_encoder_forward.1} parent=55 // pred_region
        %s1097 = smul.u32 16, %s22
      $region60: #{dataset_encoder_forward.1} parent=55 // pred_fallthru
        _
      // Predicated region
      $region61: #{dataset_encoder_forward.1} parent=55 // pred_check
        %p1098 = pneg %p260
      $region62: #{dataset_encoder_forward.1} parent=55 // pred_check_branch
        %1100 = sbr.rel (%p1098) target = $region64
      $region63: #{dataset_encoder_forward.1} parent=55 // pred_region
        _
      $region64: #{dataset_encoder_forward.1} parent=55 // pred_fallthru
        _
    $region56: #{dataset_encoder_forward.1} parent=5 // pred_fallthru
      _
    %p1101 = scmp.le.s32.totalorder 2, %s17
    // Predicated region
    $region65: #{dataset_encoder_forward.1} parent=5 // pred_check
      %p1102 = pneg %p1101
    $region66: #{dataset_encoder_forward.1} parent=5 // pred_check_branch
      %1104 = sbr.rel (%p1102) target = $region68
    $region67: #{dataset_encoder_forward.1} parent=5 // pred_region
      %s1105 = ssub.s32 %s17, 2
      // Predicated region
      $region69: #{dataset_encoder_forward.1} parent=67 // pred_check
        %p1106 = pneg %p240
      $region70: #{dataset_encoder_forward.1} parent=67 // pred_check_branch
        %1108 = sbr.rel (%p1106) target = $region72
      $region71: #{dataset_encoder_forward.1} parent=67 // pred_region
        %s1109 = smul.u32 16, %s23
        %p1110 = scmp.lt.s32.totalorder %s1109, 47
        %s1111 = scalar_select %p1110, %s1109, 47
        %s1112 = smul.addr %s1111, 8
        %s1113 = scalar_lea.vmem %s9, %s1112
      $region72: #{dataset_encoder_forward.1} parent=67 // pred_fallthru
        _
      // Predicated region
      $region73: #{dataset_encoder_forward.1} parent=67 // pred_check
        %p1114 = pneg %p266
      $region74: #{dataset_encoder_forward.1} parent=67 // pred_check_branch
        %1116 = sbr.rel (%p1114) target = $region76
      $region75: #{dataset_encoder_forward.1} parent=67 // pred_region
        %p1117 = scmp.lt.s32.totalorder %s23, 2
        %s1118 = scalar_select %p1117, %s23, 2
        %s1119 = smul.addr %s1118, 8
        %s1120 = scalar_lea.vmem %s10, %s1119
      $region76: #{dataset_encoder_forward.1} parent=67 // pred_fallthru
        _
    $region68: #{dataset_encoder_forward.1} parent=5 // pred_fallthru
      _
  $region6: #{dataset_encoder_forward.1} parent=0 // loop_footer
    %s21 = sadd.s32 1, %s17
  $region7: #{dataset_encoder_forward.1} parent=0 // loop_footer_branch
    %16 = sbr.rel target = $region3
  $region8: #{dataset_encoder_forward.1} parent=0 // loop_exit
    _

</llo_original>
